<compile_context>
chip_gen: v7x
topology: tpu7x:2x2x1
jax: 0.10.0
libtpu: 0.0.40
codegen_flags: <defaults>
</compile_context>

<pallas_src>
import jax
import jax.numpy as jnp
from jax.experimental import pallas as pl
from jax.experimental.pallas import tpu as pltpu

NEG_SLOPE = 0.01


def _leaky(v):
    # LeakyReLU(0.01): for slope < 1 this equals max(v, slope*v).
    return jnp.maximum(v, NEG_SLOPE * v)


def pose_refine_kernel(x_ref, w1_ref, b1_ref, w2_ref, b2_ref, w3_ref, b3_ref, o_ref):
    bt, _, n = x_ref.shape                          # static block sizes

    def shifted_stack(v):
        # v: (bt, C, N) -> (bt, 3C, N) = [x[n-1]; x[n]; x[n+1]] stacked on channels,
        # zero at the point-axis edges (Conv1d padding=1).  roll is an XLU lane
        # rotation (jnp.roll semantics); the wrapped edge column is masked to zero.
        lane = jax.lax.broadcasted_iota(jnp.int32, v.shape, 2)
        prev = jnp.where(lane == 0, 0.0, pltpu.roll(v, 1, 2))        # v[n-1]
        nxt = jnp.where(lane == n - 1, 0.0, pltpu.roll(v, n - 1, 2))  # v[n+1]
        return jnp.concatenate([prev, v, nxt], axis=1)

    def conv(stacked, w_ref, b_ref):
        # stacked: (bt, K, N); w_ref: (Cout, K); b_ref: (Cout, 1).
        # Broadcast the (tiny) weight across bt and do ONE batched matmul so the
        # result lands directly in (bt, Cout, N) — no output transpose needed.
        w = jnp.broadcast_to(w_ref[...], (bt,) + tuple(w_ref.shape))
        y = jax.lax.dot_general(
            w, stacked,
            dimension_numbers=(((2,), (1,)), ((0,), (0,))),
            preferred_element_type=jnp.float32)
        return y + b_ref[...]                       # bias broadcasts over (bt, ., N)

    x = x_ref[...].astype(jnp.float32)              # (bt, Cin, N)

    x1 = _leaky(conv(shifted_stack(x), w1_ref, b1_ref))     # (bt, 16, N)
    x2 = _leaky(conv(shifted_stack(x1), w2_ref, b2_ref))    # (bt, 32, N)

    pointfeat = jnp.concatenate([x1, x2], axis=1)            # (bt, 48, N), aligned concat
    x3 = _leaky(conv(pointfeat, w3_ref, b3_ref))             # (bt, 32, N)

    o_ref[...] = x3.astype(o_ref.dtype)


def _choose_batch_tile(B, Cin, N, *, target_out_bytes=1 << 20, vmem_budget=20 << 20):
    """Size the batch tile: ~1 MB output blocks, bounded VMEM, >=2 grid steps, divides B."""
    out_row = 32 * N * 4
    in_row = Cin * N * 4
    # rough f32 intermediates per batch row (stacked1, x1, stacked2, x2, pointfeat,
    # x3, shift temporaries); leading-dim-padded channel counts are small anyway.
    interm_row = (3 * Cin + 16 + 48 + 32 + 48 + 32 + 32) * N * 4

    bt = max(1, target_out_bytes // out_row)
    per_row_vmem = 2 * (in_row + out_row) + interm_row       # 2x for double-buffered IO
    while bt > 1 and bt * per_row_vmem > vmem_budget:
        bt -= 1
    bt = min(bt, B)
    if B >= 2:
        bt = min(bt, pl.cdiv(B, 2))     # keep both v7x TensorCores busy (>=2 parallel steps)
    while B % bt:                       # snap to a divisor of B (no padded garbage rows)
        bt -= 1
    return bt


def pose_refine_net_feat(x_ncl, params, *, out_dtype=jnp.float32):
    """x_ncl: (B, Cin, N) like PyTorch Conv1d input.  Returns (B, 32, N)."""
    w1, b1, w2, b2, w3, b3 = params                 # PyTorch layouts (Cout, Cin, K), (Cout,)

    B, Cin, N = x_ncl.shape
    Cout = w3.shape[0]                              # 32

    # Pack weights once in the wrapper.
    # Conv1d taps k=0,1,2 correspond to shifts [prev, center, nxt]; the stacked RHS
    # is tap-major / channel-minor, so pack W as (Cout, K, Cin) flattened -> (Cout, 3*Cin).
    w1p = jnp.transpose(w1, (0, 2, 1)).reshape(w1.shape[0], 3 * Cin)   # (16, 3*Cin)
    w2p = jnp.transpose(w2, (0, 2, 1)).reshape(w2.shape[0], 3 * 16)    # (32, 48)
    w3p = w3[:, :, 0]                                                  # (32, 48) — 1x1 conv
    b1c = b1.reshape(-1, 1)                          # (16, 1) broadcast over lanes
    b2c = b2.reshape(-1, 1)                          # (32, 1)
    b3c = b3.reshape(-1, 1)                          # (32, 1)

    bt = _choose_batch_tile(B, Cin, N)
    grid = (pl.cdiv(B, bt),)

    full = lambda a: pl.BlockSpec(a.shape, lambda i: (0,) * a.ndim)

    out = pl.pallas_call(
        pose_refine_kernel,
        out_shape=jax.ShapeDtypeStruct((B, Cout, N), out_dtype),
        grid=grid,
        in_specs=[
            pl.BlockSpec((bt, Cin, N), lambda i: (i, 0, 0)),   # x, NCL-native
            full(w1p), full(b1c),                              # conv1 (packed taps)
            full(w2p), full(b2c),                              # conv2 (packed taps)
            full(w3p), full(b3c),                              # conv3 (1x1)
        ],
        out_specs=pl.BlockSpec((bt, Cout, N), lambda i: (i, 0, 0)),
        compiler_params=pltpu.CompilerParams(
            dimension_semantics=("parallel",),
            vmem_limit_bytes=32 * 1024 * 1024),
    )(x_ncl, w1p, b1c, w2p, b2c, w3p, b3c)

    return out                                                  # (B, 32, N)


def init_params(key, in_channel=3):
    """Deterministic parameter init in PyTorch Conv1d layouts."""
    k1, k2, k3, k4, k5, k6 = jax.random.split(key, 6)
    w1 = jax.random.normal(k1, (16, in_channel, 3), jnp.float32) * 0.1
    b1 = jax.random.normal(k2, (16,), jnp.float32) * 0.1
    w2 = jax.random.normal(k3, (32, 16, 3), jnp.float32) * 0.1
    b2 = jax.random.normal(k4, (32,), jnp.float32) * 0.1
    w3 = jax.random.normal(k5, (32, 48, 1), jnp.float32) * 0.1   # 48 = 16 + 32
    b3 = jax.random.normal(k6, (32,), jnp.float32) * 0.1
    return (w1, b1, w2, b2, w3, b3)


def reference_forward(x, params):
    """Plain-JAX reference matching the PyTorch forward (NCL in / NCL out)."""
    w1, b1, w2, b2, w3, b3 = params

    def conv1d_k3(v, w, b):                          # v (B,C,N), w (O,C,3), b (O,)
        n = v.shape[-1]
        vp = jnp.pad(v, ((0, 0), (0, 0), (1, 1)))
        y = sum(jnp.einsum('oc,bcn->bon', w[:, :, k], vp[:, :, k:k + n])
                for k in range(3))
        return y + b[None, :, None]

    leaky = lambda t: jnp.where(t > 0, t, NEG_SLOPE * t)
    x1 = leaky(conv1d_k3(x, w1, b1))
    x2 = leaky(conv1d_k3(x1, w2, b2))
    pointfeat = jnp.concatenate([x1, x2], axis=1)
    x3 = leaky(jnp.einsum('oc,bcn->bon', w3[:, :, 0], pointfeat) + b3[None, :, None])
    return x3


if __name__ == "__main__":
    key = jax.random.PRNGKey(0)
    kx, kp = jax.random.split(key)

    B, Cin, N = 2, 3, 256          # N multiple of 128 -> lane-dense loads/stores
    x = jax.random.normal(kx, (B, Cin, N), jnp.float32)
    params = init_params(kp, in_channel=Cin)

    out = jax.block_until_ready(pose_refine_net_feat(x, params))
    ref = reference_forward(x, params)

    assert out.shape == (B, 32, N), out.shape
    assert jnp.allclose(out, ref, atol=1e-4, rtol=1e-4), \
        float(jnp.max(jnp.abs(out - ref)))

    print("KERNEL_OK")
</pallas_src>

<mosaic_0001>
module attributes {stable_mosaic.version = 11 : i64} {
  func.func @pose_refine_kernel(%arg0: i32, %arg1: memref<1x3x256xf32, #tpu.memory_space<vmem>>, %arg2: memref<16x9xf32, #tpu.memory_space<vmem>>, %arg3: memref<16x1xf32, #tpu.memory_space<vmem>>, %arg4: memref<32x48xf32, #tpu.memory_space<vmem>>, %arg5: memref<32x1xf32, #tpu.memory_space<vmem>>, %arg6: memref<32x48xf32, #tpu.memory_space<vmem>>, %arg7: memref<32x1xf32, #tpu.memory_space<vmem>>, %arg8: memref<1x32x256xf32, #tpu.memory_space<vmem>>) attributes {dimension_semantics = [#tpu.dimension_semantics<parallel>], iteration_bounds = array<i64: 2>, scalar_prefetch = 0 : i64, scratch_operands = 0 : i64, tpu.core_type = #tpu.core_type<tc>, window_params = [{transform_indices = @transform_0, window_bounds = array<i64: 1, 3, 256>}, {pipeline_mode = #tpu.pipeline_mode<synchronous>, transform_indices = @transform_1, window_bounds = array<i64: 16, 9>}, {pipeline_mode = #tpu.pipeline_mode<synchronous>, transform_indices = @transform_2, window_bounds = array<i64: 16, 1>}, {pipeline_mode = #tpu.pipeline_mode<synchronous>, transform_indices = @transform_3, window_bounds = array<i64: 32, 48>}, {pipeline_mode = #tpu.pipeline_mode<synchronous>, transform_indices = @transform_4, window_bounds = array<i64: 32, 1>}, {pipeline_mode = #tpu.pipeline_mode<synchronous>, transform_indices = @transform_5, window_bounds = array<i64: 32, 48>}, {pipeline_mode = #tpu.pipeline_mode<synchronous>, transform_indices = @transform_6, window_bounds = array<i64: 32, 1>}, {transform_indices = @transform_7, window_bounds = array<i64: 1, 32, 256>}]} {
    %c0 = arith.constant 0 : index
    %c0_0 = arith.constant 0 : index
    %c0_1 = arith.constant 0 : index
    %0 = vector.load %arg1[%c0, %c0_0, %c0_1] : memref<1x3x256xf32, #tpu.memory_space<vmem>>, vector<1x3x256xf32>
    %1 = tpu.iota {dimensions = array<i32: 2>} : vector<1x3x256xi32>
    %c0_i32 = arith.constant 0 : i32
    %2 = vector.broadcast %c0_i32 : i32 to vector<1x3x256xi32>
    %3 = arith.cmpi eq, %1, %2 : vector<1x3x256xi32>
    %c1_i32 = arith.constant 1 : i32
    %4 = tpu.dynamic_rotate %0 by %c1_i32 dim 2 : vector<1x3x256xf32>, i32 -> vector<1x3x256xf32>
    %cst = arith.constant 0.000000e+00 : f32
    %5 = vector.broadcast %cst : f32 to vector<1x3x256xf32>
    %6 = arith.select %3, %5, %4 : vector<1x3x256xi1>, vector<1x3x256xf32>
    %c255_i32 = arith.constant 255 : i32
    %7 = vector.broadcast %c255_i32 : i32 to vector<1x3x256xi32>
    %8 = arith.cmpi eq, %1, %7 : vector<1x3x256xi32>
    %c255_i32_2 = arith.constant 255 : i32
    %9 = tpu.dynamic_rotate %0 by %c255_i32_2 dim 2 : vector<1x3x256xf32>, i32 -> vector<1x3x256xf32>
    %cst_3 = arith.constant 0.000000e+00 : f32
    %10 = vector.broadcast %cst_3 : f32 to vector<1x3x256xf32>
    %11 = arith.select %8, %10, %9 : vector<1x3x256xi1>, vector<1x3x256xf32>
    %12 = tpu.concatenate %6, %0, %11 in 1 : vector<1x3x256xf32>, vector<1x3x256xf32>, vector<1x3x256xf32> -> vector<1x9x256xf32>
    %c0_4 = arith.constant 0 : index
    %c0_5 = arith.constant 0 : index
    %13 = vector.load %arg2[%c0_4, %c0_5] : memref<16x9xf32, #tpu.memory_space<vmem>>, vector<16x9xf32>
    %14 = vector.shape_cast %13 : vector<16x9xf32> to vector<1x16x9xf32>
    %cst_6 = arith.constant dense<0.000000e+00> : vector<1x16x256xf32>
    %15 = tpu.matmul %14, %12, %cst_6 {dimension_numbers = #tpu.dot_dimension_numbers<[2], [1], [1], [2], [0, 0, 0, 1, 1, 2], [0], [0]>} : vector<1x16x9xf32>, vector<1x9x256xf32>, vector<1x16x256xf32> -> vector<1x16x256xf32>
    %c0_7 = arith.constant 0 : index
    %c0_8 = arith.constant 0 : index
    %16 = vector.load %arg3[%c0_7, %c0_8] : memref<16x1xf32, #tpu.memory_space<vmem>>, vector<16x1xf32>
    %17 = vector.shape_cast %16 : vector<16x1xf32> to vector<1x16x1xf32>
    %18 = vector.broadcast %17 : vector<1x16x1xf32> to vector<1x16x256xf32>
    %19 = arith.addf %15, %18 : vector<1x16x256xf32>
    %cst_9 = arith.constant 0.00999999977 : f32
    %20 = vector.broadcast %cst_9 : f32 to vector<1x16x256xf32>
    %21 = arith.mulf %20, %19 : vector<1x16x256xf32>
    %22 = arith.maximumf %19, %21 : vector<1x16x256xf32>
    %23 = tpu.iota {dimensions = array<i32: 2>} : vector<1x16x256xi32>
    %c0_i32_10 = arith.constant 0 : i32
    %24 = vector.broadcast %c0_i32_10 : i32 to vector<1x16x256xi32>
    %25 = arith.cmpi eq, %23, %24 : vector<1x16x256xi32>
    %c1_i32_11 = arith.constant 1 : i32
    %26 = tpu.dynamic_rotate %22 by %c1_i32_11 dim 2 : vector<1x16x256xf32>, i32 -> vector<1x16x256xf32>
    %cst_12 = arith.constant 0.000000e+00 : f32
    %27 = vector.broadcast %cst_12 : f32 to vector<1x16x256xf32>
    %28 = arith.select %25, %27, %26 : vector<1x16x256xi1>, vector<1x16x256xf32>
    %c255_i32_13 = arith.constant 255 : i32
    %29 = vector.broadcast %c255_i32_13 : i32 to vector<1x16x256xi32>
    %30 = arith.cmpi eq, %23, %29 : vector<1x16x256xi32>
    %c255_i32_14 = arith.constant 255 : i32
    %31 = tpu.dynamic_rotate %22 by %c255_i32_14 dim 2 : vector<1x16x256xf32>, i32 -> vector<1x16x256xf32>
    %cst_15 = arith.constant 0.000000e+00 : f32
    %32 = vector.broadcast %cst_15 : f32 to vector<1x16x256xf32>
    %33 = arith.select %30, %32, %31 : vector<1x16x256xi1>, vector<1x16x256xf32>
    %34 = tpu.concatenate %28, %22, %33 in 1 : vector<1x16x256xf32>, vector<1x16x256xf32>, vector<1x16x256xf32> -> vector<1x48x256xf32>
    %c0_16 = arith.constant 0 : index
    %c0_17 = arith.constant 0 : index
    %35 = vector.load %arg4[%c0_16, %c0_17] : memref<32x48xf32, #tpu.memory_space<vmem>>, vector<32x48xf32>
    %36 = vector.shape_cast %35 : vector<32x48xf32> to vector<1x32x48xf32>
    %cst_18 = arith.constant dense<0.000000e+00> : vector<1x32x256xf32>
    %37 = tpu.matmul %36, %34, %cst_18 {dimension_numbers = #tpu.dot_dimension_numbers<[2], [1], [1], [2], [0, 0, 0, 1, 1, 2], [0], [0]>} : vector<1x32x48xf32>, vector<1x48x256xf32>, vector<1x32x256xf32> -> vector<1x32x256xf32>
    %c0_19 = arith.constant 0 : index
    %c0_20 = arith.constant 0 : index
    %38 = vector.load %arg5[%c0_19, %c0_20] : memref<32x1xf32, #tpu.memory_space<vmem>>, vector<32x1xf32>
    %39 = vector.shape_cast %38 : vector<32x1xf32> to vector<1x32x1xf32>
    %40 = vector.broadcast %39 : vector<1x32x1xf32> to vector<1x32x256xf32>
    %41 = arith.addf %37, %40 : vector<1x32x256xf32>
    %cst_21 = arith.constant 0.00999999977 : f32
    %42 = vector.broadcast %cst_21 : f32 to vector<1x32x256xf32>
    %43 = arith.mulf %42, %41 : vector<1x32x256xf32>
    %44 = arith.maximumf %41, %43 : vector<1x32x256xf32>
    %45 = tpu.concatenate %22, %44 in 1 : vector<1x16x256xf32>, vector<1x32x256xf32> -> vector<1x48x256xf32>
    %c0_22 = arith.constant 0 : index
    %c0_23 = arith.constant 0 : index
    %46 = vector.load %arg6[%c0_22, %c0_23] : memref<32x48xf32, #tpu.memory_space<vmem>>, vector<32x48xf32>
    %47 = vector.shape_cast %46 : vector<32x48xf32> to vector<1x32x48xf32>
    %cst_24 = arith.constant dense<0.000000e+00> : vector<1x32x256xf32>
    %48 = tpu.matmul %47, %45, %cst_24 {dimension_numbers = #tpu.dot_dimension_numbers<[2], [1], [1], [2], [0, 0, 0, 1, 1, 2], [0], [0]>} : vector<1x32x48xf32>, vector<1x48x256xf32>, vector<1x32x256xf32> -> vector<1x32x256xf32>
    %c0_25 = arith.constant 0 : index
    %c0_26 = arith.constant 0 : index
    %49 = vector.load %arg7[%c0_25, %c0_26] : memref<32x1xf32, #tpu.memory_space<vmem>>, vector<32x1xf32>
    %50 = vector.shape_cast %49 : vector<32x1xf32> to vector<1x32x1xf32>
    %51 = vector.broadcast %50 : vector<1x32x1xf32> to vector<1x32x256xf32>
    %52 = arith.addf %48, %51 : vector<1x32x256xf32>
    %cst_27 = arith.constant 0.00999999977 : f32
    %53 = vector.broadcast %cst_27 : f32 to vector<1x32x256xf32>
    %54 = arith.mulf %53, %52 : vector<1x32x256xf32>
    %55 = arith.maximumf %52, %54 : vector<1x32x256xf32>
    %c0_28 = arith.constant 0 : index
    %c0_29 = arith.constant 0 : index
    %c0_30 = arith.constant 0 : index
    %56 = vector.load %arg8[%c0_28, %c0_29, %c0_30] : memref<1x32x256xf32, #tpu.memory_space<vmem>>, vector<1x32x256xf32>
    tpu.vector_store %arg8[%c0_28, %c0_29, %c0_30], %55 {strides = array<i32>} : memref<1x32x256xf32, #tpu.memory_space<vmem>>, vector<1x32x256xf32>,
    return
  }
  func.func @transform_0(%arg0: i32) -> (i32, i32, i32) {
    %c0_i32 = arith.constant 0 : i32
    %c0_i32_0 = arith.constant 0 : i32
    %c0_i32_1 = arith.constant 0 : i32
    return %arg0, %c0_i32, %c0_i32_0 : i32, i32, i32
  }
  func.func @transform_1(%arg0: i32) -> (i32, i32) {
    %c0_i32 = arith.constant 0 : i32
    %c0_i32_0 = arith.constant 0 : i32
    %c0_i32_1 = arith.constant 0 : i32
    return %c0_i32, %c0_i32_0 : i32, i32
  }
  func.func @transform_2(%arg0: i32) -> (i32, i32) {
    %c0_i32 = arith.constant 0 : i32
    %c0_i32_0 = arith.constant 0 : i32
    %c0_i32_1 = arith.constant 0 : i32
    return %c0_i32, %c0_i32_0 : i32, i32
  }
  func.func @transform_3(%arg0: i32) -> (i32, i32) {
    %c0_i32 = arith.constant 0 : i32
    %c0_i32_0 = arith.constant 0 : i32
    %c0_i32_1 = arith.constant 0 : i32
    return %c0_i32, %c0_i32_0 : i32, i32
  }
  func.func @transform_4(%arg0: i32) -> (i32, i32) {
    %c0_i32 = arith.constant 0 : i32
    %c0_i32_0 = arith.constant 0 : i32
    %c0_i32_1 = arith.constant 0 : i32
    return %c0_i32, %c0_i32_0 : i32, i32
  }
  func.func @transform_5(%arg0: i32) -> (i32, i32) {
    %c0_i32 = arith.constant 0 : i32
    %c0_i32_0 = arith.constant 0 : i32
    %c0_i32_1 = arith.constant 0 : i32
    return %c0_i32, %c0_i32_0 : i32, i32
  }
  func.func @transform_6(%arg0: i32) -> (i32, i32) {
    %c0_i32 = arith.constant 0 : i32
    %c0_i32_0 = arith.constant 0 : i32
    %c0_i32_1 = arith.constant 0 : i32
    return %c0_i32, %c0_i32_0 : i32, i32
  }
  func.func @transform_7(%arg0: i32) -> (i32, i32, i32) {
    %c0_i32 = arith.constant 0 : i32
    %c0_i32_0 = arith.constant 0 : i32
    %c0_i32_1 = arith.constant 0 : i32
    return %arg0, %c0_i32, %c0_i32_0 : i32, i32, i32
  }
}

</mosaic_0001>

<llo_original>
// kernel: tpu_custom_call.1
$region0: #{tpu_custom_call.1}
  #allocation0 [shape = 'u32[]', space=smem, size = 0x4, offset = 0x4, fixed_abs, tag = 'smem constant byte address 0x4 - core index']
  #allocation1 [shape = 'u32[144,128]{1,0:T(1,128)}', space=vmem, size = 0x12000, scoped, tag = 'internal scratch']
  %s0 = inlined_call_operand.vmem [shape: f32[2,3,256], index: 0, kind: input, shape index: {}]
  %s1 = inlined_call_operand.vmem [shape: f32[16,9], index: 1, kind: input, shape index: {}]
  %s2 = inlined_call_operand.vmem [shape: f32[16,1], index: 2, kind: input, shape index: {}]
  %s3 = inlined_call_operand.vmem [shape: f32[32,48], index: 3, kind: input, shape index: {}]
  %s4 = inlined_call_operand.vmem [shape: f32[32,1], index: 4, kind: input, shape index: {}]
  %s5 = inlined_call_operand.vmem [shape: f32[32,48], index: 5, kind: input, shape index: {}]
  %s6 = inlined_call_operand.vmem [shape: f32[32,1], index: 6, kind: input, shape index: {}]
  %s7 = inlined_call_operand.hbm [shape: f32[2,32,256], index: 7, kind: output, shape index: {}]
  %s8 = sld [smem:[#allocation0]]
  $region61: #{tpu_custom_call.1} parent=0
    _
  %s10 = ssub.s32 1, %s8
  %s11 = scalar_select 0, %s10, %s8
  $region1: #{tpu_custom_call.1} parent=0
    #allocation2 [shape = 'u8[65536]{0}', space=vmem, size = 0x10000, scoped, tag = 'output window, operand 0']
    #allocation3 [shape = 's32[2]{0}', space=sflag, size = 0x8, scoped, tag = 'scoped memory for tpu_custom_call.1']
    %12 = vsyncpa [#allocation3], 0
    %s13 = scalar_lea.sflag [#allocation3], 1
    %14 = vsyncpa %s13, 0
    loop: start=0, step=1, limit=4
    $region2: #{tpu_custom_call.1} parent=1 // loop_pre_header
      _
    $region3: #{tpu_custom_call.1} parent=1 // loop_header
      %s16 = sphi 0, %s20
      %p17 = scmp.ge.s32.totalorder %s16, 4
      %s26 = sphi 0, %s28
      %s29 = sphi 0, %s26
      %s30 = sphi 0, %s29
      %s46 = sphi 0, %s30
      %s50 = sphi 0, %s50
      %s52 = sphi 0, %s50
      %s53 = sphi 0, %s52
      %s67 = sphi 0, %s53
      %s71 = sphi 0, %s71
      %s73 = sphi 0, %s71
      %s74 = sphi 0, %s73
      %s88 = sphi 0, %s74
      %s92 = sphi 0, %s92
      %s94 = sphi 0, %s92
      %s95 = sphi 0, %s94
      %s109 = sphi 0, %s95
      %s113 = sphi 0, %s113
      %s115 = sphi 0, %s113
      %s116 = sphi 0, %s115
      %s130 = sphi 0, %s116
      %s134 = sphi 0, %s134
      %s136 = sphi 0, %s134
      %s137 = sphi 0, %s136
      %s151 = sphi 0, %s137
      %s155 = sphi 0, %s155
      %s157 = sphi 0, %s155
      %s158 = sphi 0, %s157
      %s172 = sphi 0, %s158
      %s178 = sphi 0, %s180
      %s181 = sphi 0, %s178
      %s182 = sphi 0, %s181
      %s198 = sphi 0, %s182
    $region4: #{tpu_custom_call.1} parent=1 // loop_header_branch
      %19 = sbr.rel (%p17) target = $region8
    $region5: #{tpu_custom_call.1} parent=1 // loop_body
      %s21 = ssub.s32 %s16, 1
      %s22 = ssub.s32 %s16, 2
      %s23 = sadd.s32 %s16, 1
      %s24 = ssub.s32 %s16, %s23
      %p25 = scmp.eq.s32.totalorder %s24, 0
      %s27 = sadd.s32 %s26, 1
      %s28 = scalar_select %p25, %s26, %s27
      %p31 = pneg %p25
      %p32 = scmp.eq.s32.totalorder %s16, 1
      %p33 = por %p31, %p32
      %p34 = scmp.ne.s32.totalorder %s26, %s29
      %p35 = scmp.eq.s32.totalorder %s16, 0
      %p36 = por %p34, %p35
      %p37 = scmp.ne.s32.totalorder %s26, %s29
      %p38 = scmp.eq.s32.totalorder %s21, 1
      %p39 = por %p37, %p38
      %p40 = scmp.ne.s32.totalorder %s29, %s30
      %p41 = scmp.eq.s32.totalorder %s21, 0
      %p42 = por %p40, %p41
      %p43 = scmp.ne.s32.totalorder %s29, %s30
      %p44 = scmp.eq.s32.totalorder %s22, 1
      %p45 = por %p43, %p44
      %p47 = scmp.ne.s32.totalorder %s30, %s46
      %p48 = scmp.eq.s32.totalorder %s22, 0
      %p49 = por %p47, %p48
      %s51 = sadd.s32 %s50, 1
      %p54 = scmp.eq.s32.totalorder %s16, 1
      %p55 = scmp.ne.s32.totalorder %s50, %s52
      %p56 = scmp.eq.s32.totalorder %s16, 0
      %p57 = por %p55, %p56
      %p58 = scmp.ne.s32.totalorder %s50, %s52
      %p59 = scmp.eq.s32.totalorder %s21, 1
      %p60 = por %p58, %p59
      %p61 = scmp.ne.s32.totalorder %s52, %s53
      %p62 = scmp.eq.s32.totalorder %s21, 0
      %p63 = por %p61, %p62
      %p64 = scmp.ne.s32.totalorder %s52, %s53
      %p65 = scmp.eq.s32.totalorder %s22, 1
      %p66 = por %p64, %p65
      %p68 = scmp.ne.s32.totalorder %s53, %s67
      %p69 = scmp.eq.s32.totalorder %s22, 0
      %p70 = por %p68, %p69
      %s72 = sadd.s32 %s71, 1
      %p75 = scmp.eq.s32.totalorder %s16, 1
      %p76 = scmp.ne.s32.totalorder %s71, %s73
      %p77 = scmp.eq.s32.totalorder %s16, 0
      %p78 = por %p76, %p77
      %p79 = scmp.ne.s32.totalorder %s71, %s73
      %p80 = scmp.eq.s32.totalorder %s21, 1
      %p81 = por %p79, %p80
      %p82 = scmp.ne.s32.totalorder %s73, %s74
      %p83 = scmp.eq.s32.totalorder %s21, 0
      %p84 = por %p82, %p83
      %p85 = scmp.ne.s32.totalorder %s73, %s74
      %p86 = scmp.eq.s32.totalorder %s22, 1
      %p87 = por %p85, %p86
      %p89 = scmp.ne.s32.totalorder %s74, %s88
      %p90 = scmp.eq.s32.totalorder %s22, 0
      %p91 = por %p89, %p90
      %s93 = sadd.s32 %s92, 1
      %p96 = scmp.eq.s32.totalorder %s16, 1
      %p97 = scmp.ne.s32.totalorder %s92, %s94
      %p98 = scmp.eq.s32.totalorder %s16, 0
      %p99 = por %p97, %p98
      %p100 = scmp.ne.s32.totalorder %s92, %s94
      %p101 = scmp.eq.s32.totalorder %s21, 1
      %p102 = por %p100, %p101
      %p103 = scmp.ne.s32.totalorder %s94, %s95
      %p104 = scmp.eq.s32.totalorder %s21, 0
      %p105 = por %p103, %p104
      %p106 = scmp.ne.s32.totalorder %s94, %s95
      %p107 = scmp.eq.s32.totalorder %s22, 1
      %p108 = por %p106, %p107
      %p110 = scmp.ne.s32.totalorder %s95, %s109
      %p111 = scmp.eq.s32.totalorder %s22, 0
      %p112 = por %p110, %p111
      %s114 = sadd.s32 %s113, 1
      %p117 = scmp.eq.s32.totalorder %s16, 1
      %p118 = scmp.ne.s32.totalorder %s113, %s115
      %p119 = scmp.eq.s32.totalorder %s16, 0
      %p120 = por %p118, %p119
      %p121 = scmp.ne.s32.totalorder %s113, %s115
      %p122 = scmp.eq.s32.totalorder %s21, 1
      %p123 = por %p121, %p122
      %p124 = scmp.ne.s32.totalorder %s115, %s116
      %p125 = scmp.eq.s32.totalorder %s21, 0
      %p126 = por %p124, %p125
      %p127 = scmp.ne.s32.totalorder %s115, %s116
      %p128 = scmp.eq.s32.totalorder %s22, 1
      %p129 = por %p127, %p128
      %p131 = scmp.ne.s32.totalorder %s116, %s130
      %p132 = scmp.eq.s32.totalorder %s22, 0
      %p133 = por %p131, %p132
      %s135 = sadd.s32 %s134, 1
      %p138 = scmp.eq.s32.totalorder %s16, 1
      %p139 = scmp.ne.s32.totalorder %s134, %s136
      %p140 = scmp.eq.s32.totalorder %s16, 0
      %p141 = por %p139, %p140
      %p142 = scmp.ne.s32.totalorder %s134, %s136
      %p143 = scmp.eq.s32.totalorder %s21, 1
      %p144 = por %p142, %p143
      %p145 = scmp.ne.s32.totalorder %s136, %s137
      %p146 = scmp.eq.s32.totalorder %s21, 0
      %p147 = por %p145, %p146
      %p148 = scmp.ne.s32.totalorder %s136, %s137
      %p149 = scmp.eq.s32.totalorder %s22, 1
      %p150 = por %p148, %p149
      %p152 = scmp.ne.s32.totalorder %s137, %s151
      %p153 = scmp.eq.s32.totalorder %s22, 0
      %p154 = por %p152, %p153
      %s156 = sadd.s32 %s155, 1
      %p159 = scmp.eq.s32.totalorder %s16, 1
      %p160 = scmp.ne.s32.totalorder %s155, %s157
      %p161 = scmp.eq.s32.totalorder %s16, 0
      %p162 = por %p160, %p161
      %p163 = scmp.ne.s32.totalorder %s155, %s157
      %p164 = scmp.eq.s32.totalorder %s21, 1
      %p165 = por %p163, %p164
      %p166 = scmp.ne.s32.totalorder %s157, %s158
      %p167 = scmp.eq.s32.totalorder %s21, 0
      %p168 = por %p166, %p167
      %p169 = scmp.ne.s32.totalorder %s157, %s158
      %p170 = scmp.eq.s32.totalorder %s22, 1
      %p171 = por %p169, %p170
      %p173 = scmp.ne.s32.totalorder %s158, %s172
      %p174 = scmp.eq.s32.totalorder %s22, 0
      %p175 = por %p173, %p174
      %s176 = ssub.s32 %s16, %s23
      %p177 = scmp.eq.s32.totalorder %s176, 0
      %s179 = sadd.s32 %s178, 1
      %s180 = scalar_select %p177, %s178, %s179
      %p183 = pneg %p177
      %p184 = scmp.eq.s32.totalorder %s16, 1
      %p185 = por %p183, %p184
      %p186 = scmp.ne.s32.totalorder %s178, %s181
      %p187 = scmp.eq.s32.totalorder %s16, 0
      %p188 = por %p186, %p187
      %p189 = scmp.ne.s32.totalorder %s178, %s181
      %p190 = scmp.eq.s32.totalorder %s21, 1
      %p191 = por %p189, %p190
      %p192 = scmp.ne.s32.totalorder %s181, %s182
      %p193 = scmp.eq.s32.totalorder %s21, 0
      %p194 = por %p192, %p193
      %p195 = scmp.ne.s32.totalorder %s181, %s182
      %p196 = scmp.eq.s32.totalorder %s22, 1
      %p197 = por %p195, %p196
      %p199 = scmp.ne.s32.totalorder %s182, %s198
      %p200 = scmp.eq.s32.totalorder %s22, 0
      %p201 = por %p199, %p200
      %p202 = scmp.le.s32.totalorder 1, %s16
      %p203 = scmp.lt.s32.totalorder %s16, 3
      %p204 = pnand %p202, %p203
      %p205 = pneg %p204
      // Predicated region
      $region9: #{tpu_custom_call.1} parent=5 // pred_check
        _
      $region10: #{tpu_custom_call.1} parent=5 // pred_check_branch
        %207 = sbr.rel (%p204) target = $region12
      $region11: #{tpu_custom_call.1} parent=5 // pred_region
        %s208 = ssub.s32 %s16, 1
        // Predicated region
        $region13: #{tpu_custom_call.1} parent=11 // pred_check
          %p209 = pneg %p63
        $region14: #{tpu_custom_call.1} parent=11 // pred_check_branch
          %211 = sbr.rel (%p209) target = $region16
        $region15: #{tpu_custom_call.1} parent=11 // pred_region
          _
        $region16: #{tpu_custom_call.1} parent=11 // pred_fallthru
          _
        // Predicated region
        $region17: #{tpu_custom_call.1} parent=11 // pred_check
          %p212 = pneg %p84
        $region18: #{tpu_custom_call.1} parent=11 // pred_check_branch
          %214 = sbr.rel (%p212) target = $region20
        $region19: #{tpu_custom_call.1} parent=11 // pred_region
          _
        $region20: #{tpu_custom_call.1} parent=11 // pred_fallthru
          _
        // Predicated region
        $region21: #{tpu_custom_call.1} parent=11 // pred_check
          %p215 = pneg %p105
        $region22: #{tpu_custom_call.1} parent=11 // pred_check_branch
          %217 = sbr.rel (%p215) target = $region24
        $region23: #{tpu_custom_call.1} parent=11 // pred_region
          _
        $region24: #{tpu_custom_call.1} parent=11 // pred_fallthru
          _
        // Predicated region
        $region25: #{tpu_custom_call.1} parent=11 // pred_check
          %p218 = pneg %p126
        $region26: #{tpu_custom_call.1} parent=11 // pred_check_branch
          %220 = sbr.rel (%p218) target = $region28
        $region27: #{tpu_custom_call.1} parent=11 // pred_region
          _
        $region28: #{tpu_custom_call.1} parent=11 // pred_fallthru
          _
        // Predicated region
        $region29: #{tpu_custom_call.1} parent=11 // pred_check
          %p221 = pneg %p147
        $region30: #{tpu_custom_call.1} parent=11 // pred_check_branch
          %223 = sbr.rel (%p221) target = $region32
        $region31: #{tpu_custom_call.1} parent=11 // pred_region
          _
        $region32: #{tpu_custom_call.1} parent=11 // pred_fallthru
          _
        // Predicated region
        $region33: #{tpu_custom_call.1} parent=11 // pred_check
          %p224 = pneg %p168
        $region34: #{tpu_custom_call.1} parent=11 // pred_check_branch
          %226 = sbr.rel (%p224) target = $region36
        $region35: #{tpu_custom_call.1} parent=11 // pred_region
          _
        $region36: #{tpu_custom_call.1} parent=11 // pred_fallthru
          _
      $region12: #{tpu_custom_call.1} parent=5 // pred_fallthru
        _
      %p227 = scmp.lt.s32.totalorder %s16, 2
      // Predicated region
      $region37: #{tpu_custom_call.1} parent=5 // pred_check
        %p228 = pneg %p227
      $region38: #{tpu_custom_call.1} parent=5 // pred_check_branch
        %230 = sbr.rel (%p228) target = $region40
      $region39: #{tpu_custom_call.1} parent=5 // pred_region
        // Predicated region
        $region41: #{tpu_custom_call.1} parent=39 // pred_check
          %p231 = pneg %p36
        $region42: #{tpu_custom_call.1} parent=39 // pred_check_branch
          %233 = sbr.rel (%p231) target = $region44
        $region43: #{tpu_custom_call.1} parent=39 // pred_region
          %p234 = scmp.lt.s32.totalorder %s16, 1
          %s235 = scalar_select %p234, %s16, 1
          %s236 = smul.addr %s235, 2
          %s237 = smul.addr %s236, 4
          %s238 = scalar_lea.vmem %s0, %s237
        $region44: #{tpu_custom_call.1} parent=39 // pred_fallthru
          _
      $region40: #{tpu_custom_call.1} parent=5 // pred_fallthru
        _
      %p239 = scmp.le.s32.totalorder 1, %s16
      %p240 = scmp.lt.s32.totalorder %s16, 3
      %p241 = pnand %p239, %p240
      %p242 = pneg %p241
      // Predicated region
      $region45: #{tpu_custom_call.1} parent=5 // pred_check
        _
      $region46: #{tpu_custom_call.1} parent=5 // pred_check_branch
        %244 = sbr.rel (%p241) target = $region48
      $region47: #{tpu_custom_call.1} parent=5 // pred_region
        %s245 = ssub.s32 %s16, 1
        %p246 = scmp.lt.s32.totalorder %s21, 1
        %s247 = scalar_select %p246, %s21, 1
        %s248 = smul.addr %s247, 2
        %s249 = smul.addr %s248, 4
        %s250 = scalar_lea.vmem %s0, %s249
        %p251 = pneg %p42
        %p252 = pneg %p39
        %p253 = pneg %p63
        %p254 = pneg %p60
        %p255 = pneg %p84
        %p256 = pneg %p81
        %p257 = pneg %p105
        %p258 = pneg %p102
        %p259 = pneg %p126
        %p260 = pneg %p123
        %p261 = pneg %p147
        %p262 = pneg %p144
        %p263 = pneg %p168
        %p264 = pneg %p165
        %p265 = pneg %p194
        %p266 = pneg %p191
        %s267 = sand.u32 %s181, 1
        %s268 = scalar_lea.sflag [#allocation3], %s267
        %s269 = sand.u32 %s181, 1
        %s270 = smul.addr %s269, 64
        %s271 = scalar_lea.vmem [#allocation2], %s270
        %p272 = scmp.lt.s32.totalorder %s21, 1
        %s273 = scalar_select %p272, %s21, 1
        %s274 = smul.addr %s273, 2
        %s275 = smul.addr %s274, 4
        %s276 = scalar_lea.vmem %s0, %s275
        %v277 = vld [vmem:[%s276] sm:$0x77]
        %v278 = vlaneseq
        %v279 = vand.u32 %v278, 127
        %v280 = vadd.s32 %v279, 128
        %vm281 = vcmp.eq.s32.totalorder %v279, 0
        %vm282 = vcmp.eq.s32.totalorder %v280, 0
        %v284 = vcombine.high %v277, %v277
        %286 = vrot.lane.b32.xlu0 %v277, 1
        %v287 = vpop.permute.xlu0 %286
        %288 = vrot.lane.b32.xlu0 %v284, 1
        %v289 = vpop.permute.xlu0 %288
        %vm290 = vcmp.lt.s32.totalorder %v279, 1
        %v291 = vsel %vm290, %v287, %v289
        %v292 = vsel %vm290, %v289, %v287
        %v293 = vsel %vm281, 0.0, %v292
        %v294 = vsel %vm282, 0.0, %v291
        %vm295 = vcmp.eq.s32.totalorder %v279, 255
        %vm296 = vcmp.eq.s32.totalorder %v280, 255
        %297 = vrot.lane.b32.xlu0 %v277, 127
        %v298 = vpop.permute.xlu0 %297
        %299 = vrot.lane.b32.xlu0 %v284, 127
        %v300 = vpop.permute.xlu0 %299
        %vm301 = vcmp.lt.s32.totalorder %v279, 127
        %v302 = vsel %vm301, %v298, %v300
        %v303 = vsel %vm301, %v300, %v298
        %v304 = vsel %vm295, 0.0, %v302
        %v305 = vsel %vm296, 0.0, %v303
        %v306 = vrot.slane %v277, 5
        %v307 = vrot.slane %v284, 5
        %v312 = vrot.slane %v304, 2
        %v313 = vrot.slane %v305, 2
        %vm316 = vcmask 1042432
        %v317 = vsel %vm316, %v293, %v306
        %v318 = vsel %vm316, %v294, %v307
        %vm319 = vcmask 1045504
        %v320 = vsel %vm319, %v317, %v312
        %v321 = vsel %vm319, %v318, %v313
        %v322 = vld [vmem:[%s1] sm:$0xff]
        %v323 = vld [vmem:[%s1 + $0x8] sm:$0xff]
        %v324 = vld [vmem:[%s2] sm:$0xff]
        %v325 = vld [vmem:[%s2 + $0x8] sm:$0xff]
        %327 = vset.pattern.permute.xlu0 0
        %328 = vperm.xlu0 %327, %v324
        %v329 = vpop.permute.xlu0 %328
        %332 = vset.pattern.permute.xlu0 0
        %333 = vperm.xlu0 %332, %v325
        %v334 = vpop.permute.xlu0 %333
        %vm336 = vcmask 72704
        %v338 = vsel %vm336, %v322, 0
        %v341 = vsel %vm336, %v323, 0
        %vm343 = vcmask 1040384
        %v344 = vsel %vm343, %v312, 0
        %v346 = vsel %vm343, %v313, 0
        %348 = vmatprep.subr.mxu0 %v321
        %349 = vmatpush1.msra.mxu0 %v320
        %350 = vmatprep.subr.mxu0 %v346
        %351 = vmatpush1.msra.mxu0 %v344
        %352 = vmatprep.subr.mxu0 0.0
        %353 = vmatpush1.msra.mxu0 0.0
        %354 = vmatprep.subr.mxu0 0.0
        %355 = vmatpush1.msra.mxu0 0.0
        %356 = vmatprep.subr.mxu0 0.0
        %357 = vmatpush1.msra.mxu0 0.0
        %358 = vmatprep.subr.mxu0 0.0
        %359 = vmatpush1.msra.mxu0 0.0
        %360 = vmatprep.subr.mxu0 0.0
        %361 = vmatpush1.msra.mxu0 0.0
        %362 = vmatprep.subr.mxu0 0.0
        %363 = vmatpush1.msra.mxu0 0.0
        %364 = vmatprep.subr.mxu0 0.0
        %365 = vmatpush1.msra.mxu0 0.0
        %366 = vmatprep.subr.mxu0 0.0
        %367 = vmatpush1.msra.mxu0 0.0
        %368 = vmatprep.subr.mxu0 0.0
        %369 = vmatpush1.msra.mxu0 0.0
        %370 = vmatprep.subr.mxu0 0.0
        %371 = vmatpush1.msra.mxu0 0.0
        %372 = vmatprep.subr.mxu0 0.0
        %373 = vmatpush1.msra.mxu0 0.0
        %374 = vmatprep.subr.mxu0 0.0
        %375 = vmatpush1.msra.mxu0 0.0
        %376 = vmatprep.subr.mxu0 0.0
        %377 = vmatpush1.msra.mxu0 0.0
        %378 = vmatprep.subr.mxu0 0.0
        %379 = vmatpush1.msra.mxu0 0.0
        %380 = vmatprep.subr.mxu0 0.0
        %381 = vmatpush1.msra.mxu0 0.0
        %382 = vmatprep.subr.mxu0 0.0
        %383 = vmatpush1.msra.mxu0 0.0
        %384 = vmatprep.subr.mxu0 0.0
        %385 = vmatpush1.msra.mxu0 0.0
        %386 = vmatprep.subr.mxu0 0.0
        %387 = vmatpush1.msra.mxu0 0.0
        %388 = vmatprep.subr.mxu0 0.0
        %389 = vmatpush1.msra.mxu0 0.0
        %390 = vmatprep.subr.mxu0 0.0
        %391 = vmatpush1.msra.mxu0 0.0
        %392 = vmatprep.subr.mxu0 0.0
        %393 = vmatpush1.msra.mxu0 0.0
        %394 = vmatprep.subr.mxu0 0.0
        %395 = vmatpush1.msra.mxu0 0.0
        %396 = vmatprep.subr.mxu0 0.0
        %397 = vmatpush1.msra.mxu0 0.0
        %398 = vmatprep.subr.mxu0 0.0
        %399 = vmatpush1.msra.mxu0 0.0
        %400 = vmatprep.subr.mxu0 0.0
        %401 = vmatpush1.msra.mxu0 0.0
        %402 = vmatprep.subr.mxu0 0.0
        %403 = vmatpush1.msra.mxu0 0.0
        %404 = vmatprep.subr.mxu0 0.0
        %405 = vmatpush1.msra.mxu0 0.0
        %406 = vmatprep.subr.mxu0 0.0
        %407 = vmatpush1.msra.mxu0 0.0
        %408 = vmatprep.subr.mxu0 0.0
        %409 = vmatpush1.msra.mxu0 0.0
        %410 = vmatprep.subr.mxu0 0.0
        %411 = vmatpush1.msra.mxu0 0.0
        %412 = vmatprep.mubr.f32.mxu0 0.0
        %413 = vmatmul.mubr.f32.gmra.mrb[0].mxu0 %v338
        %v414 = vpop.f32.mrb[0].mxu0
        %v415 = vadd.f32 %v329, %v414
        %v416 = vpop.f32.mrb[0].mxu0
        %v417 = vadd.f32 %v329, %v416
        %418 = vmatprep.mubr.f32.mxu0 0.0
        %419 = vmatmul.mubr.f32.gmra.mrb[0].mxu0 %v341
        %v420 = vpop.f32.mrb[0].mxu0
        %v421 = vadd.f32 %v334, %v420
        %v422 = vpop.f32.mrb[0].mxu0
        %v423 = vadd.f32 %v334, %v422
        %424 = vdwg.mxu0
        %v425 = vmul.f32 %v415, 0.01
        %v426 = vmul.f32 %v417, 0.01
        %v427 = vmul.f32 %v421, 0.01
        %v428 = vmul.f32 %v423, 0.01
        %v429 = vmax.f32 %v415, %v425
        %v430 = vmax.f32 %v417, %v426
        %v431 = vmax.f32 %v421, %v427
        %v432 = vmax.f32 %v423, %v428
        %433 = vrot.lane.b32.xlu0 %v429, 1
        %v434 = vpop.permute.xlu0 %433
        %435 = vrot.lane.b32.xlu0 %v431, 1
        %v436 = vpop.permute.xlu0 %435
        %437 = vrot.lane.b32.xlu0 %v430, 1
        %v438 = vpop.permute.xlu0 %437
        %439 = vrot.lane.b32.xlu0 %v432, 1
        %v440 = vpop.permute.xlu0 %439
        %v441 = vsel %vm290, %v434, %v438
        %v442 = vsel %vm290, %v436, %v440
        %v443 = vsel %vm290, %v438, %v434
        %v444 = vsel %vm290, %v440, %v436
        %v445 = vsel %vm281, 0.0, %v443
        %v446 = vsel %vm282, 0.0, %v441
        %v447 = vsel %vm281, 0.0, %v444
        %v448 = vsel %vm282, 0.0, %v442
        %449 = vrot.lane.b32.xlu0 %v429, 127
        %v450 = vpop.permute.xlu0 %449
        %451 = vrot.lane.b32.xlu0 %v431, 127
        %v452 = vpop.permute.xlu0 %451
        %453 = vrot.lane.b32.xlu0 %v430, 127
        %v454 = vpop.permute.xlu0 %453
        %455 = vrot.lane.b32.xlu0 %v432, 127
        %v456 = vpop.permute.xlu0 %455
        %v457 = vsel %vm301, %v450, %v454
        %v458 = vsel %vm301, %v452, %v456
        %v459 = vsel %vm301, %v454, %v450
        %v460 = vsel %vm301, %v456, %v452
        %v461 = vsel %vm295, 0.0, %v457
        %v462 = vsel %vm296, 0.0, %v459
        %v463 = vsel %vm295, 0.0, %v458
        %v464 = vsel %vm296, 0.0, %v460
        %v465 = vld [vmem:[%s3] sm:$0xff]
        %v466 = vld [vmem:[%s3 + $0x8] sm:$0xff]
        %v467 = vld [vmem:[%s3 + $0x10] sm:$0xff]
        %v468 = vld [vmem:[%s3 + $0x18] sm:$0xff]
        %v469 = vld [vmem:[%s4] sm:$0xff]
        %v470 = vld [vmem:[%s4 + $0x8] sm:$0xff]
        %v471 = vld [vmem:[%s4 + $0x10] sm:$0xff]
        %v472 = vld [vmem:[%s4 + $0x18] sm:$0xff]
        %474 = vset.pattern.permute.xlu0 0
        %475 = vperm.xlu0 %474, %v469
        %v476 = vpop.permute.xlu0 %475
        %479 = vset.pattern.permute.xlu0 0
        %480 = vperm.xlu0 %479, %v470
        %v481 = vpop.permute.xlu0 %480
        %484 = vset.pattern.permute.xlu0 0
        %485 = vperm.xlu0 %484, %v471
        %v486 = vpop.permute.xlu0 %485
        %489 = vset.pattern.permute.xlu0 0
        %490 = vperm.xlu0 %489, %v472
        %v491 = vpop.permute.xlu0 %490
        %vm493 = vcmask 392192
        %v495 = vsel %vm493, %v465, 0
        %v498 = vsel %vm493, %v466, 0
        %v501 = vsel %vm493, %v467, 0
        %v504 = vsel %vm493, %v468, 0
        %506 = vmatprep.subr.mxu0 %v446
        %507 = vmatpush1.msra.mxu0 %v445
        %508 = vmatprep.subr.mxu0 %v448
        %509 = vmatpush1.msra.mxu0 %v447
        %510 = vmatprep.subr.mxu0 %v430
        %511 = vmatpush1.msra.mxu0 %v429
        %512 = vmatprep.subr.mxu0 %v432
        %513 = vmatpush1.msra.mxu0 %v431
        %514 = vmatprep.subr.mxu0 %v462
        %515 = vmatpush1.msra.mxu0 %v461
        %516 = vmatprep.subr.mxu0 %v464
        %517 = vmatpush1.msra.mxu0 %v463
        %518 = vmatprep.subr.mxu0 0.0
        %519 = vmatpush1.msra.mxu0 0.0
        %520 = vmatprep.subr.mxu0 0.0
        %521 = vmatpush1.msra.mxu0 0.0
        %522 = vmatprep.subr.mxu0 0.0
        %523 = vmatpush1.msra.mxu0 0.0
        %524 = vmatprep.subr.mxu0 0.0
        %525 = vmatpush1.msra.mxu0 0.0
        %526 = vmatprep.subr.mxu0 0.0
        %527 = vmatpush1.msra.mxu0 0.0
        %528 = vmatprep.subr.mxu0 0.0
        %529 = vmatpush1.msra.mxu0 0.0
        %530 = vmatprep.subr.mxu0 0.0
        %531 = vmatpush1.msra.mxu0 0.0
        %532 = vmatprep.subr.mxu0 0.0
        %533 = vmatpush1.msra.mxu0 0.0
        %534 = vmatprep.subr.mxu0 0.0
        %535 = vmatpush1.msra.mxu0 0.0
        %536 = vmatprep.subr.mxu0 0.0
        %537 = vmatpush1.msra.mxu0 0.0
        %538 = vmatprep.subr.mxu0 0.0
        %539 = vmatpush1.msra.mxu0 0.0
        %540 = vmatprep.subr.mxu0 0.0
        %541 = vmatpush1.msra.mxu0 0.0
        %542 = vmatprep.subr.mxu0 0.0
        %543 = vmatpush1.msra.mxu0 0.0
        %544 = vmatprep.subr.mxu0 0.0
        %545 = vmatpush1.msra.mxu0 0.0
        %546 = vmatprep.subr.mxu0 0.0
        %547 = vmatpush1.msra.mxu0 0.0
        %548 = vmatprep.subr.mxu0 0.0
        %549 = vmatpush1.msra.mxu0 0.0
        %550 = vmatprep.subr.mxu0 0.0
        %551 = vmatpush1.msra.mxu0 0.0
        %552 = vmatprep.subr.mxu0 0.0
        %553 = vmatpush1.msra.mxu0 0.0
        %554 = vmatprep.subr.mxu0 0.0
        %555 = vmatpush1.msra.mxu0 0.0
        %556 = vmatprep.subr.mxu0 0.0
        %557 = vmatpush1.msra.mxu0 0.0
        %558 = vmatprep.subr.mxu0 0.0
        %559 = vmatpush1.msra.mxu0 0.0
        %560 = vmatprep.subr.mxu0 0.0
        %561 = vmatpush1.msra.mxu0 0.0
        %562 = vmatprep.subr.mxu0 0.0
        %563 = vmatpush1.msra.mxu0 0.0
        %564 = vmatprep.subr.mxu0 0.0
        %565 = vmatpush1.msra.mxu0 0.0
        %566 = vmatprep.subr.mxu0 0.0
        %567 = vmatpush1.msra.mxu0 0.0
        %568 = vmatprep.subr.mxu0 0.0
        %569 = vmatpush1.msra.mxu0 0.0
        %570 = vmatprep.mubr.f32.mxu0 0.0
        %571 = vmatmul.mubr.f32.gmra.mrb[0].mxu0 %v495
        %v572 = vpop.f32.mrb[0].mxu0
        %v573 = vadd.f32 %v476, %v572
        %v574 = vpop.f32.mrb[0].mxu0
        %v575 = vadd.f32 %v476, %v574
        %576 = vmatprep.mubr.f32.mxu0 0.0
        %577 = vmatmul.mubr.f32.gmra.mrb[0].mxu0 %v498
        %v578 = vpop.f32.mrb[0].mxu0
        %v579 = vadd.f32 %v481, %v578
        %v580 = vpop.f32.mrb[0].mxu0
        %v581 = vadd.f32 %v481, %v580
        %582 = vmatprep.mubr.f32.mxu0 0.0
        %583 = vmatmul.mubr.f32.gmra.mrb[0].mxu0 %v501
        %v584 = vpop.f32.mrb[0].mxu0
        %v585 = vadd.f32 %v486, %v584
        %v586 = vpop.f32.mrb[0].mxu0
        %v587 = vadd.f32 %v486, %v586
        %588 = vmatprep.mubr.f32.mxu0 0.0
        %589 = vmatmul.mubr.f32.gmra.mrb[0].mxu0 %v504
        %v590 = vpop.f32.mrb[0].mxu0
        %v591 = vadd.f32 %v491, %v590
        %v592 = vpop.f32.mrb[0].mxu0
        %v593 = vadd.f32 %v491, %v592
        %594 = vdwg.mxu0
        %v595 = vmul.f32 %v573, 0.01
        %v596 = vmul.f32 %v575, 0.01
        %v597 = vmul.f32 %v579, 0.01
        %v598 = vmul.f32 %v581, 0.01
        %v599 = vmul.f32 %v585, 0.01
        %v600 = vmul.f32 %v587, 0.01
        %v601 = vmul.f32 %v591, 0.01
        %v602 = vmul.f32 %v593, 0.01
        %v603 = vmax.f32 %v573, %v595
        %v604 = vmax.f32 %v575, %v596
        %v605 = vmax.f32 %v579, %v597
        %v606 = vmax.f32 %v581, %v598
        %v607 = vmax.f32 %v585, %v599
        %v608 = vmax.f32 %v587, %v600
        %v609 = vmax.f32 %v591, %v601
        %v610 = vmax.f32 %v593, %v602
        %v611 = vld [vmem:[%s5] sm:$0xff]
        %v612 = vld [vmem:[%s5 + $0x8] sm:$0xff]
        %v613 = vld [vmem:[%s5 + $0x10] sm:$0xff]
        %v614 = vld [vmem:[%s5 + $0x18] sm:$0xff]
        %v615 = vld [vmem:[%s6] sm:$0xff]
        %v616 = vld [vmem:[%s6 + $0x8] sm:$0xff]
        %v617 = vld [vmem:[%s6 + $0x10] sm:$0xff]
        %v618 = vld [vmem:[%s6 + $0x18] sm:$0xff]
        %620 = vset.pattern.permute.xlu0 0
        %621 = vperm.xlu0 %620, %v615
        %v622 = vpop.permute.xlu0 %621
        %625 = vset.pattern.permute.xlu0 0
        %626 = vperm.xlu0 %625, %v616
        %v627 = vpop.permute.xlu0 %626
        %630 = vset.pattern.permute.xlu0 0
        %631 = vperm.xlu0 %630, %v617
        %v632 = vpop.permute.xlu0 %631
        %635 = vset.pattern.permute.xlu0 0
        %636 = vperm.xlu0 %635, %v618
        %v637 = vpop.permute.xlu0 %636
        %v640 = vsel %vm493, %v611, 0
        %v643 = vsel %vm493, %v612, 0
        %v646 = vsel %vm493, %v613, 0
        %v649 = vsel %vm493, %v614, 0
        %651 = vmatprep.subr.mxu0 %v430
        %652 = vmatpush1.msra.mxu0 %v429
        %653 = vmatprep.subr.mxu0 %v432
        %654 = vmatpush1.msra.mxu0 %v431
        %655 = vmatprep.subr.mxu0 %v604
        %656 = vmatpush1.msra.mxu0 %v603
        %657 = vmatprep.subr.mxu0 %v606
        %658 = vmatpush1.msra.mxu0 %v605
        %659 = vmatprep.subr.mxu0 %v608
        %660 = vmatpush1.msra.mxu0 %v607
        %661 = vmatprep.subr.mxu0 %v610
        %662 = vmatpush1.msra.mxu0 %v609
        %663 = vmatprep.subr.mxu0 0.0
        %664 = vmatpush1.msra.mxu0 0.0
        %665 = vmatprep.subr.mxu0 0.0
        %666 = vmatpush1.msra.mxu0 0.0
        %667 = vmatprep.subr.mxu0 0.0
        %668 = vmatpush1.msra.mxu0 0.0
        %669 = vmatprep.subr.mxu0 0.0
        %670 = vmatpush1.msra.mxu0 0.0
        %671 = vmatprep.subr.mxu0 0.0
        %672 = vmatpush1.msra.mxu0 0.0
        %673 = vmatprep.subr.mxu0 0.0
        %674 = vmatpush1.msra.mxu0 0.0
        %675 = vmatprep.subr.mxu0 0.0
        %676 = vmatpush1.msra.mxu0 0.0
        %677 = vmatprep.subr.mxu0 0.0
        %678 = vmatpush1.msra.mxu0 0.0
        %679 = vmatprep.subr.mxu0 0.0
        %680 = vmatpush1.msra.mxu0 0.0
        %681 = vmatprep.subr.mxu0 0.0
        %682 = vmatpush1.msra.mxu0 0.0
        %683 = vmatprep.subr.mxu0 0.0
        %684 = vmatpush1.msra.mxu0 0.0
        %685 = vmatprep.subr.mxu0 0.0
        %686 = vmatpush1.msra.mxu0 0.0
        %687 = vmatprep.subr.mxu0 0.0
        %688 = vmatpush1.msra.mxu0 0.0
        %689 = vmatprep.subr.mxu0 0.0
        %690 = vmatpush1.msra.mxu0 0.0
        %691 = vmatprep.subr.mxu0 0.0
        %692 = vmatpush1.msra.mxu0 0.0
        %693 = vmatprep.subr.mxu0 0.0
        %694 = vmatpush1.msra.mxu0 0.0
        %695 = vmatprep.subr.mxu0 0.0
        %696 = vmatpush1.msra.mxu0 0.0
        %697 = vmatprep.subr.mxu0 0.0
        %698 = vmatpush1.msra.mxu0 0.0
        %699 = vmatprep.subr.mxu0 0.0
        %700 = vmatpush1.msra.mxu0 0.0
        %701 = vmatprep.subr.mxu0 0.0
        %702 = vmatpush1.msra.mxu0 0.0
        %703 = vmatprep.subr.mxu0 0.0
        %704 = vmatpush1.msra.mxu0 0.0
        %705 = vmatprep.subr.mxu0 0.0
        %706 = vmatpush1.msra.mxu0 0.0
        %707 = vmatprep.subr.mxu0 0.0
        %708 = vmatpush1.msra.mxu0 0.0
        %709 = vmatprep.subr.mxu0 0.0
        %710 = vmatpush1.msra.mxu0 0.0
        %711 = vmatprep.subr.mxu0 0.0
        %712 = vmatpush1.msra.mxu0 0.0
        %713 = vmatprep.subr.mxu0 0.0
        %714 = vmatpush1.msra.mxu0 0.0
        %715 = vmatprep.mubr.f32.mxu0 0.0
        %716 = vmatmul.mubr.f32.gmra.mrb[0].mxu0 %v640
        %v717 = vpop.f32.mrb[0].mxu0
        %v718 = vadd.f32 %v622, %v717
        %v719 = vpop.f32.mrb[0].mxu0
        %v720 = vadd.f32 %v622, %v719
        %721 = vmatprep.mubr.f32.mxu0 0.0
        %722 = vmatmul.mubr.f32.gmra.mrb[0].mxu0 %v643
        %v723 = vpop.f32.mrb[0].mxu0
        %v724 = vadd.f32 %v627, %v723
        %v725 = vpop.f32.mrb[0].mxu0
        %v726 = vadd.f32 %v627, %v725
        %727 = vmatprep.mubr.f32.mxu0 0.0
        %728 = vmatmul.mubr.f32.gmra.mrb[0].mxu0 %v646
        %v729 = vpop.f32.mrb[0].mxu0
        %v730 = vadd.f32 %v632, %v729
        %v731 = vpop.f32.mrb[0].mxu0
        %v732 = vadd.f32 %v632, %v731
        %733 = vmatprep.mubr.f32.mxu0 0.0
        %734 = vmatmul.mubr.f32.gmra.mrb[0].mxu0 %v649
        %v735 = vpop.f32.mrb[0].mxu0
        %v736 = vadd.f32 %v637, %v735
        %v737 = vpop.f32.mrb[0].mxu0
        %v738 = vadd.f32 %v637, %v737
        %739 = vdwg.mxu0
        %v740 = vmul.f32 %v718, 0.01
        %v741 = vmul.f32 %v720, 0.01
        %v742 = vmul.f32 %v724, 0.01
        %v743 = vmul.f32 %v726, 0.01
        %v744 = vmul.f32 %v730, 0.01
        %v745 = vmul.f32 %v732, 0.01
        %v746 = vmul.f32 %v736, 0.01
        %v747 = vmul.f32 %v738, 0.01
        %v748 = vmax.f32 %v718, %v740
        %v749 = vmax.f32 %v720, %v741
        %v750 = vmax.f32 %v724, %v742
        %v751 = vmax.f32 %v726, %v743
        %v752 = vmax.f32 %v730, %v744
        %v753 = vmax.f32 %v732, %v745
        %v754 = vmax.f32 %v736, %v746
        %v755 = vmax.f32 %v738, %v747
        %756 = vst [vmem:[%s271] sm:$0xff] %v748
        %757 = vst [vmem:[%s271 + $0x8] sm:$0xff] %v749
        %758 = vst [vmem:[%s271 + $0x10] sm:$0xff] %v750
        %759 = vst [vmem:[%s271 + $0x18] sm:$0xff] %v751
        %760 = vst [vmem:[%s271 + $0x20] sm:$0xff] %v752
        %761 = vst [vmem:[%s271 + $0x28] sm:$0xff] %v753
        %762 = vst [vmem:[%s271 + $0x30] sm:$0xff] %v754
        %763 = vst [vmem:[%s271 + $0x38] sm:$0xff] %v755
        %s764 = sand.u32 %s181, 1
        %s765 = scalar_lea.sflag [#allocation3], %s764
        %s766 = sand.u32 %s181, 1
        %s767 = smul.addr %s766, 64
        %s768 = scalar_lea.vmem [#allocation2], %s767
        // Predicated region
        $region49: #{tpu_custom_call.1} parent=47 // pred_check
          %p769 = pneg %p191
        $region50: #{tpu_custom_call.1} parent=47 // pred_check_branch
          %771 = sbr.rel (%p769) target = $region52
        $region51: #{tpu_custom_call.1} parent=47 // pred_region
          %s773 = ssub.s32 1024, 1024
          %774 = vsyncadd %s765, %s773
          %s775 = smul.addr %s21, 8
          %s776 = smul.addr %s775, 128
          %s777 = scalar_lea.hbm %s7, %s776
          %s778 = sshll.u32 %s768, 4
          %s779 = int_to_ptr.vmem [resolvable:$true] %s778
          %784 = dma.vmem_to_hbm [thread:$0]  %s779, 1024, %s777, %s765, 256, 256, 16
        $region52: #{tpu_custom_call.1} parent=47 // pred_fallthru
          _
      $region48: #{tpu_custom_call.1} parent=5 // pred_fallthru
        _
      %p785 = scmp.le.s32.totalorder 2, %s16
      // Predicated region
      $region53: #{tpu_custom_call.1} parent=5 // pred_check
        %p786 = pneg %p785
      $region54: #{tpu_custom_call.1} parent=5 // pred_check_branch
        %788 = sbr.rel (%p786) target = $region56
      $region55: #{tpu_custom_call.1} parent=5 // pred_region
        %s789 = ssub.s32 %s16, 2
        // Predicated region
        $region57: #{tpu_custom_call.1} parent=55 // pred_check
          %p790 = pneg %p197
        $region58: #{tpu_custom_call.1} parent=55 // pred_check_branch
          %792 = sbr.rel (%p790) target = $region60
        $region59: #{tpu_custom_call.1} parent=55 // pred_region
          %s793 = sand.u32 %s182, 1
          %s794 = scalar_lea.sflag [#allocation3], %s793
          %s795 = sand.u32 %s182, 1
          %s796 = smul.addr %s795, 64
          %s797 = scalar_lea.vmem [#allocation2], %s796
          %798 = dma.done %s794, 1024
        $region60: #{tpu_custom_call.1} parent=55 // pred_fallthru
          _
      $region56: #{tpu_custom_call.1} parent=5 // pred_fallthru
        _
    $region6: #{tpu_custom_call.1} parent=1 // loop_footer
      %s20 = sadd.s32 1, %s16
    $region7: #{tpu_custom_call.1} parent=1 // loop_footer_branch
      %15 = sbr.rel target = $region3
    $region8: #{tpu_custom_call.1} parent=1 // loop_exit
      _
    %799 = vsyncpa [#allocation3], 1
    %s800 = scalar_lea.sflag [#allocation3], 1
    %801 = vsyncpa %s800, 1

</llo_original>
